<compile_context>
chip_gen: v7x
topology: tpu7x:2x2x1
jax: 0.10.0
libtpu: 0.0.40
codegen_flags: <defaults>
</compile_context>

<pallas_src>
import jax
import jax.numpy as jnp
from jax.experimental import pallas as pl
from jax.experimental.pallas import tpu as pltpu

_INV_127_5 = 1.0 / 127.5
_TARGET_BLOCK_ELEMS = 1 << 20      # ~4 MiB per f32 buffer per step
_SMALL_INPUT_ELEMS = 1024          # below this, Pallas launch is pure overhead
_LANE_CHOICES = (2048, 1024, 512, 256, 128)


def _normalize_kernel(x_ref, o_ref):
    # bm / 127.5 - 1 as mul-by-reciprocal + sub (pure VALU; kernel is HBM-bound).
    o_ref[...] = x_ref[...].astype(o_ref.dtype) * _INV_127_5 - 1.0


def net_forward(x):
    """Pallas implementation of Net.forward. RDTR treated as identity."""
    orig_shape = x.shape
    in_dtype = x.dtype
    out_dtype = in_dtype if jnp.issubdtype(in_dtype, jnp.floating) else jnp.float32
    total = int(x.size)

    # Tiny-input fast path: let XLA fuse the two VALU ops (a Pallas launch for
    # a few KiB is pure overhead and would leave a v7x TensorCore idle).
    if total < _SMALL_INPUT_ELEMS:
        return (x.astype(out_dtype) * _INV_127_5 - 1.0).astype(out_dtype)

    # Lane-dense 2-D view: widest lane width that divides the flat size means
    # zero padding and the final reshape back to orig_shape is a metadata op.
    lanes = next((c for c in _LANE_CHOICES if total % c == 0), None)
    flat = x.reshape(-1)
    padded = False
    if lanes is None:
        # Ragged tail: pad only to the next lane multiple (< 512 elements),
        # NOT to a whole block.
        lanes = 512
        rows = pl.cdiv(total, lanes)
        flat = jnp.pad(flat, (0, rows * lanes - total))
        padded = True
    else:
        rows = total // lanes
    x2d = flat.reshape(rows, lanes)

    # Row tiling: ~1M elements per block. Partial last blocks are fine
    # (block dims are (8,128)-aligned; Pallas masks the out-of-bounds writes).
    block_rows = min(max(_TARGET_BLOCK_ELEMS // lanes, 8), rows)
    if block_rows != rows:
        block_rows = max(8, (block_rows // 8) * 8)
    num_blocks = pl.cdiv(rows, block_rows)
    if num_blocks == 1 and rows >= 16:
        # Split so both v7x TensorCores get work (no-op effect on v5e/v6e).
        block_rows = max(8, ((pl.cdiv(rows, 2) + 7) // 8) * 8)
        num_blocks = pl.cdiv(rows, block_rows)

    # In-place write only when dtypes match (otherwise shapes/bytes differ).
    aliases = {0: 0} if out_dtype == in_dtype else {}

    out2d = pl.pallas_call(
        _normalize_kernel,
        out_shape=jax.ShapeDtypeStruct((rows, lanes), out_dtype),
        grid=(num_blocks,),
        in_specs=[pl.BlockSpec((block_rows, lanes), lambda i: (i, 0))],
        out_specs=pl.BlockSpec((block_rows, lanes), lambda i: (i, 0)),
        input_output_aliases=aliases,
        compiler_params=pltpu.CompilerParams(
            dimension_semantics=("parallel",),
            vmem_limit_bytes=32 * 1024 * 1024,
        ),
    )(x2d)

    if padded:
        return out2d.reshape(-1)[:total].reshape(orig_shape)
    return out2d.reshape(orig_shape)


if __name__ == "__main__":
    key = jax.random.PRNGKey(0)
    net_forward_jit = jax.jit(net_forward)

    # Small NCHW input consistent with the module's forward signature.
    x = jax.random.uniform(
        key, (2, 4, 16, 16), dtype=jnp.float32, minval=0.0, maxval=255.0
    )
    y = jax.block_until_ready(net_forward_jit(x))
    ref = x / 127.5 - 1.0
    assert y.shape == x.shape and y.dtype == x.dtype
    assert jnp.allclose(y, ref, atol=1e-5), "mismatch vs reference"

    # Ragged size: exercises the minimal-pad + slice-back path.
    x2 = jax.random.uniform(
        jax.random.PRNGKey(1), (2, 3, 15, 17), dtype=jnp.float32,
        minval=0.0, maxval=255.0,
    )
    y2 = jax.block_until_ready(net_forward_jit(x2))
    assert y2.shape == x2.shape
    assert jnp.allclose(y2, x2 / 127.5 - 1.0, atol=1e-5), "mismatch (ragged)"

    # Multi-step grid: exercises the 2-block split + partial last block.
    x3 = jax.random.uniform(
        jax.random.PRNGKey(2), (4, 3, 64, 64), dtype=jnp.float32,
        minval=0.0, maxval=255.0,
    )
    y3 = jax.block_until_ready(net_forward_jit(x3))
    assert y3.shape == x3.shape
    assert jnp.allclose(y3, x3 / 127.5 - 1.0, atol=1e-5), "mismatch (multi-block)"

    print("KERNEL_OK")
</pallas_src>

<mosaic_0001>
module attributes {stable_mosaic.version = 11 : i64} {
  func.func @_normalize_kernel(%arg0: i32, %arg1: memref<1x2048xf32, #tpu.memory_space<vmem>>, %arg2: memref<1x2048xf32, #tpu.memory_space<vmem>>) attributes {dimension_semantics = [#tpu.dimension_semantics<parallel>], iteration_bounds = array<i64: 1>, scalar_prefetch = 0 : i64, scratch_operands = 0 : i64, tpu.core_type = #tpu.core_type<tc>, window_params = [{transform_indices = @transform_0, window_bounds = array<i64: 1, 2048>}, {transform_indices = @transform_1, window_bounds = array<i64: 1, 2048>}]} {
    %c0 = arith.constant 0 : index
    %c0_0 = arith.constant 0 : index
    %0 = vector.load %arg1[%c0, %c0_0] : memref<1x2048xf32, #tpu.memory_space<vmem>>, vector<1x2048xf32>
    %cst = arith.constant 0.00784313772 : f32
    %1 = vector.broadcast %cst : f32 to vector<1x2048xf32>
    %2 = arith.mulf %0, %1 : vector<1x2048xf32>
    %cst_1 = arith.constant 1.000000e+00 : f32
    %3 = vector.broadcast %cst_1 : f32 to vector<1x2048xf32>
    %4 = arith.subf %2, %3 : vector<1x2048xf32>
    %c0_2 = arith.constant 0 : index
    %c0_3 = arith.constant 0 : index
    %5 = vector.load %arg2[%c0_2, %c0_3] : memref<1x2048xf32, #tpu.memory_space<vmem>>, vector<1x2048xf32>
    tpu.vector_store %arg2[%c0_2, %c0_3], %4 {strides = array<i32>} : memref<1x2048xf32, #tpu.memory_space<vmem>>, vector<1x2048xf32>,
    return
  }
  func.func @transform_0(%arg0: i32) -> (i32, i32) {
    %c0_i32 = arith.constant 0 : i32
    %c0_i32_0 = arith.constant 0 : i32
    return %arg0, %c0_i32 : i32, i32
  }
  func.func @transform_1(%arg0: i32) -> (i32, i32) {
    %c0_i32 = arith.constant 0 : i32
    %c0_i32_0 = arith.constant 0 : i32
    return %arg0, %c0_i32 : i32, i32
  }
}

</mosaic_0001>

<llo_original>
// kernel: net_forward.1
$region0: #{net_forward.1}
  #allocation0 [shape = 'u32[]', space=smem, size = 0x4, offset = 0x4, fixed_abs, tag = 'smem constant byte address 0x4 - core index']
  #allocation1 [shape = 'u32[144,128]{1,0:T(1,128)}', space=vmem, size = 0x12000, scoped, tag = 'internal scratch']
  %s0 = inlined_call_operand.vmem [shape: f32[1,2048], index: 0, kind: input, shape index: {}, may-alias: {0,1}]
  %s1 = inlined_call_operand.vmem [shape: f32[1,2048], index: 1, kind: output, shape index: {}, may-alias: {0,1}]
  %s2 = sld [smem:[#allocation0]]
  $region14: #{net_forward.1} parent=0
    _
  %s4 = ssub.s32 1, %s2
  %s5 = scalar_select 0, %s4, %s2
  // Predicated region
  $region2: #{net_forward.1} parent=0 // pred_check
    _
  $region3: #{net_forward.1} parent=0 // pred_check_branch
    %7 = sbr.rel (0) target = $region5
  $region4: #{net_forward.1} parent=0 // pred_region
    _
  $region5: #{net_forward.1} parent=0 // pred_fallthru
    _
  %v8 = vld [vmem:[%s0] sm:$0xff]
  %v9 = vld [vmem:[%s0 + $0x8] sm:$0xff]
  %v10 = vmul.f32 %v8, 0.007843138
  %v11 = vmul.f32 %v9, 0.007843138
  %v12 = vsub.f32 %v10, 1.0
  %v13 = vsub.f32 %v11, 1.0
  %14 = vst [vmem:[%s1] sm:$0xff] %v12
  %15 = vst [vmem:[%s1 + $0x8] sm:$0xff] %v13
  // Predicated region
  $region6: #{net_forward.1} parent=0 // pred_check
    _
  $region7: #{net_forward.1} parent=0 // pred_check_branch
    %17 = sbr.rel (0) target = $region9
  $region8: #{net_forward.1} parent=0 // pred_region
    _
  $region9: #{net_forward.1} parent=0 // pred_fallthru
    _
  // Predicated region
  $region10: #{net_forward.1} parent=0 // pred_check
    _
  $region11: #{net_forward.1} parent=0 // pred_check_branch
    %19 = sbr.rel (0) target = $region13
  $region12: #{net_forward.1} parent=0 // pred_region
    _
  $region13: #{net_forward.1} parent=0 // pred_fallthru
    _

</llo_original>
